<compile_context>
chip_gen: v7x
topology: tpu7x:2x2x1
jax: 0.10.0
libtpu: 0.0.40
codegen_flags: <defaults>
</compile_context>

<pallas_src>
import functools

import jax
import jax.numpy as jnp
from jax.experimental import pallas as pl
from jax.experimental.pallas import tpu as pltpu

LANE = 128
HID = 512          # SimpleMLP hidden width (fixed by the module)
IGNORE_INDEX = -100


def _round_up(n, m):
    return ((n + m - 1) // m) * m


def _cdiv(a, b):
    return -(-a // b)


# ----------------------------- kernel bodies ------------------------------- #
def _mlp_core(x_ref, w1_ref, b1_ref, w2_ref, b2_ref):
    """weight_norm'd Linear -> ReLU -> (Dropout p=0.0) -> Linear, f32 accum."""
    x = x_ref[...].astype(jnp.bfloat16)            # in-kernel cast: no wrapper pre-pass
    h = jnp.dot(x, w1_ref[...], preferred_element_type=jnp.float32)
    h = jnp.maximum(h + b1_ref[...], 0.0)          # bias + ReLU in f32 (v5e: no bf16 VPU)
    logits = jnp.dot(h.astype(jnp.bfloat16), w2_ref[...],
                     preferred_element_type=jnp.float32)
    return logits + b2_ref[...]


def _mlp_head_kernel(x_ref, w1_ref, b1_ref, w2_ref, b2_ref, o_ref):
    o_ref[...] = _mlp_core(x_ref, w1_ref, b1_ref, w2_ref, b2_ref).astype(o_ref.dtype)


def _mlp_head_loss_kernel(x_ref, w1_ref, b1_ref, w2_ref, b2_ref, tgt_ref,
                          o_ref, nll_ref, valid_ref, corr_ref, *, num_labels):
    """MLP + fused CrossEntropy / accuracy epilogue (per-row partials)."""
    logits = _mlp_core(x_ref, w1_ref, b1_ref, w2_ref, b2_ref)
    o_ref[...] = logits.astype(o_ref.dtype)

    tb, lp = logits.shape
    t = tgt_ref[...]                                              # (TB, 1) int32
    col = jax.lax.broadcasted_iota(jnp.int32, (tb, lp), 1)
    masked = jnp.where(col < num_labels, logits, -jnp.inf)        # hide Lp padding
    m = jnp.max(masked, axis=-1, keepdims=True)                   # (TB, 1)
    lse = m + jnp.log(jnp.sum(jnp.exp(masked - m), axis=-1, keepdims=True))
    tgt_logit = jnp.sum(jnp.where(col == t, logits, 0.0), axis=-1, keepdims=True)
    pred = jnp.min(jnp.where(masked == m, col, lp), axis=-1, keepdims=True)
    valid = t != IGNORE_INDEX                                     # (TB, 1) bool

    nll_ref[...] = jnp.where(valid, lse - tgt_logit, 0.0)
    valid_ref[...] = valid.astype(jnp.float32)
    corr_ref[...] = jnp.where(valid & (pred == t), 1.0, 0.0)


# ------------------------------ tiling policy ------------------------------ #
def _pick_tile(B, Hp, Lp, x_itemsize, tb_max=512, vmem_budget=28 * 1024 * 1024):
    """Batch tile: multiple of 16 (bf16 sublane granule), padding-aware,
    VMEM-budgeted so it stays under v7x's 32 MiB scoped default."""
    if B <= 8:
        return _round_up(max(B, 1), 8)
    n_tiles = max(1, _cdiv(B, tb_max))
    if n_tiles == 1 and B >= 256:
        n_tiles = 2            # give v7x's two TensorCores >=2 batch tiles to split
    tb = _round_up(_cdiv(B, n_tiles), 16)

    def vmem_bytes(tb):
        x = 2 * tb * Hp * x_itemsize                      # double-buffered x tile
        w = (Hp * HID + HID * Lp) * 2                     # single-buffered bf16 weights
        bias = (HID + Lp) * 4 * 8                         # (1,.) tiles pad to 8 sublanes
        out = 2 * tb * Lp * 4 + 3 * 2 * tb * LANE * 4     # logits + lane-padded row stats
        return x + w + bias + out

    while tb > 16 and vmem_bytes(tb) > vmem_budget:
        tb = _round_up(tb // 2, 16)
    return tb


# ------------------------------- forward glue ------------------------------ #
def mlp_head_forward(x, prep, targets=None, *, tb_max=512):
    """Fused matmul+bias+ReLU+matmul+bias (+ optional CE/accuracy epilogue)."""
    B, H = x.shape
    Hp, Lp, num_labels = prep["Hp"], prep["Lp"], prep["num_labels"]

    need_hpad = H != Hp
    x_item = 2 if (need_hpad or x.dtype == jnp.bfloat16) else jnp.dtype(x.dtype).itemsize
    TB = _pick_tile(B, Hp, Lp, x_item, tb_max=tb_max)
    grid = _cdiv(B, TB)
    Bp = grid * TB

    if need_hpad or Bp != B:
        # One fused cast+pad pass (bf16 halves the padded-buffer traffic).  In the
        # aligned case below, x goes straight into pallas_call (no wrapper pass).
        xin = jnp.zeros((Bp, Hp), jnp.bfloat16).at[:B, :H].set(x.astype(jnp.bfloat16))
    else:
        xin = x

    # Resident operands: constant index_map + single buffer (no dead 2nd copy).
    def _resident(shape):
        return pl.BlockSpec(shape, lambda i: (0, 0), pipeline_mode=pl.Buffered(1))

    x_spec = pl.BlockSpec((TB, Hp), lambda i: (i, 0))
    w_specs = [_resident((Hp, HID)), _resident((1, HID)),
               _resident((HID, Lp)), _resident((1, Lp))]
    logits_spec = pl.BlockSpec((TB, Lp), lambda i: (i, 0))

    flops = 2 * Bp * (Hp * HID + HID * Lp)
    wbytes = (Hp * HID + HID * Lp) * 2 + (HID + Lp) * 4
    compiler_params = pltpu.CompilerParams(dimension_semantics=("parallel",))

    if targets is None:
        out = pl.pallas_call(
            _mlp_head_kernel,
            out_shape=jax.ShapeDtypeStruct((Bp, Lp), jnp.float32),
            grid=(grid,),
            in_specs=[x_spec] + w_specs,
            out_specs=logits_spec,
            compiler_params=compiler_params,
            cost_estimate=pl.CostEstimate(
                flops=flops, transcendentals=0,
                bytes_accessed=Bp * Hp * x_item + wbytes + Bp * Lp * 4),
        )(xin, prep["w1"], prep["b1"], prep["w2"], prep["b2"])
        return out[:B, :num_labels], None

    # Padded batch rows get IGNORE_INDEX so they contribute nothing to the stats.
    tgt = jnp.full((Bp, 1), IGNORE_INDEX, jnp.int32).at[:B, 0].set(
        targets.astype(jnp.int32))
    stat_spec = pl.BlockSpec((TB, 1), lambda i: (i, 0))
    stat_shape = jax.ShapeDtypeStruct((Bp, 1), jnp.float32)

    logits, nll, valid, correct = pl.pallas_call(
        functools.partial(_mlp_head_loss_kernel, num_labels=num_labels),
        out_shape=(jax.ShapeDtypeStruct((Bp, Lp), jnp.float32),
                   stat_shape, stat_shape, stat_shape),
        grid=(grid,),
        in_specs=[x_spec] + w_specs + [pl.BlockSpec((TB, 1), lambda i: (i, 0))],
        out_specs=(logits_spec, stat_spec, stat_spec, stat_spec),
        compiler_params=compiler_params,
        cost_estimate=pl.CostEstimate(
            flops=flops, transcendentals=Bp * (Lp + 1),
            bytes_accessed=Bp * Hp * x_item + wbytes + Bp * (Lp + 4) * 4),
    )(xin, prep["w1"], prep["b1"], prep["w2"], prep["b2"], tgt)

    # Tiny scalar reductions over (Bp, 1) partials (XLA fuses these).
    # PyTorch CrossEntropyLoss(reduction='mean', ignore_index=-100) averages over
    # valid targets and returns NaN when none are valid; we clamp the denominator
    # to 1 instead (same guard applied to accuracy) -- intentional deviation.
    denom = jnp.maximum(jnp.sum(valid), 1.0)
    loss = jnp.sum(nll) / denom
    acc = jnp.sum(correct) / denom
    return logits[:B, :num_labels], (loss, acc)


def sequence_classification_head(pooled_output, prep, targets=None):
    logits, loss_acc = mlp_head_forward(pooled_output, prep, targets)
    outputs = (logits,)
    if targets is not None:
        loss, acc = loss_acc
        outputs = ((loss, {"accuracy": acc}),) + outputs
    return outputs


# ------------------------- parameter construction -------------------------- #
def _weight_norm_effective(v, g):
    # torch weight_norm(dim=None): w = g * v / ||v||_F  (g is a scalar)
    return g * v / jnp.sqrt(jnp.sum(v * v))


def init_params(key, hidden_size, num_labels, hid_dim=HID):
    """PyTorch-layout params: w (out, in), b (out,)."""
    k1, k2, k3, k4 = jax.random.split(key, 4)
    bound1 = 1.0 / jnp.sqrt(hidden_size)
    v1 = jax.random.uniform(k1, (hid_dim, hidden_size), jnp.float32, -bound1, bound1)
    b1 = jax.random.uniform(k2, (hid_dim,), jnp.float32, -bound1, bound1)
    bound2 = 1.0 / jnp.sqrt(hid_dim)
    v2 = jax.random.uniform(k3, (num_labels, hid_dim), jnp.float32, -bound2, bound2)
    b2 = jax.random.uniform(k4, (num_labels,), jnp.float32, -bound2, bound2)
    # weight_norm init sets g = ||v||_F, so the effective weight equals v at init.
    w1 = _weight_norm_effective(v1, jnp.sqrt(jnp.sum(v1 * v1)))
    w2 = _weight_norm_effective(v2, jnp.sqrt(jnp.sum(v2 * v2)))
    return w1, b1, w2, b2


def prepare_params(w1, b1, w2, b2):
    """One-time prep: fold weight_norm (already folded here), transpose to
    (in, out), pad hidden/labels to lane multiples, cast weights to bf16
    (biases stay f32).  Call once, reuse every forward."""
    hidden_size = w1.shape[1]
    num_labels = w2.shape[0]
    Hp = _round_up(hidden_size, LANE)
    Lp = _round_up(num_labels, LANE)
    w1t = jnp.zeros((Hp, HID), jnp.bfloat16).at[:hidden_size, :].set(
        w1.T.astype(jnp.bfloat16))
    w2t = jnp.zeros((HID, Lp), jnp.bfloat16).at[:, :num_labels].set(
        w2.T.astype(jnp.bfloat16))
    b1t = b1.reshape(1, HID).astype(jnp.float32)
    b2t = jnp.zeros((1, Lp), jnp.float32).at[:, :num_labels].set(
        b2.reshape(1, -1).astype(jnp.float32))
    return dict(w1=w1t, b1=b1t, w2=w2t, b2=b2t,
                hidden_size=hidden_size, num_labels=num_labels, Hp=Hp, Lp=Lp)


# --------------------------------- references ------------------------------ #
def _reference_forward(x, w1, b1, w2, b2):
    h = jnp.maximum(x @ w1.T + b1, 0.0)
    return h @ w2.T + b2


def _reference_bf16_path(x, w1, b1, w2, b2):
    xb = x.astype(jnp.bfloat16).astype(jnp.float32)
    w1b = w1.astype(jnp.bfloat16).astype(jnp.float32)
    w2b = w2.astype(jnp.bfloat16).astype(jnp.float32)
    h = jnp.maximum(xb @ w1b.T + b1, 0.0)
    return h.astype(jnp.bfloat16).astype(jnp.float32) @ w2b.T + b2


def _reference_loss_acc(logits, targets):
    valid = targets != IGNORE_INDEX
    safe_t = jnp.where(valid, targets, 0)
    logp = jax.nn.log_softmax(logits, axis=-1)
    nll = -jnp.take_along_axis(logp, safe_t[:, None], axis=-1)[:, 0]
    denom = jnp.maximum(jnp.sum(valid).astype(jnp.float32), 1.0)
    loss = jnp.sum(jnp.where(valid, nll, 0.0)) / denom
    acc = jnp.sum((jnp.argmax(logits, -1) == targets) & valid).astype(jnp.float32) / denom
    return loss, acc


# ------------------------------------ main ---------------------------------- #
if __name__ == "__main__":
    key = jax.random.PRNGKey(0)
    # (hidden_size, num_labels, batch): exercise the hidden-pad path, the
    # aligned pass-through multi-tile path, and the batch-pad path.
    configs = [(32, 4, 8), (128, 10, 288), (256, 4, 40)]

    for cfg_i, (hidden_size, num_labels, batch) in enumerate(configs):
        kp, kx, kt, key = jax.random.split(key, 4)
        raw = init_params(kp, hidden_size, num_labels)
        prep = prepare_params(*raw)
        pooled_output = jax.random.normal(kx, (batch, hidden_size), jnp.float32)
        targets = jax.random.randint(kt, (batch,), 0, num_labels)
        targets = targets.at[0].set(IGNORE_INDEX)   # exercise ignore_index handling

        # Path 1: targets=None -> (logits,)
        (logits,) = sequence_classification_head(pooled_output, prep)
        logits = jax.block_until_ready(logits)
        assert logits.shape == (batch, num_labels)

        # Path 2: with targets -> ((loss, {'accuracy': acc}), logits)
        (loss, metrics), logits2 = sequence_classification_head(
            pooled_output, prep, targets)
        loss = jax.block_until_ready(loss)
        acc = jax.block_until_ready(metrics["accuracy"])
        logits2 = jax.block_until_ready(logits2)

        w1, b1, w2, b2 = raw
        ref_bf16 = _reference_bf16_path(pooled_output, w1, b1, w2, b2)
        ref_f32 = _reference_forward(pooled_output, w1, b1, w2, b2)
        assert jnp.allclose(logits, ref_bf16, atol=5e-3, rtol=5e-3), \
            f"bf16-path mismatch (cfg {cfg_i})"
        assert jnp.allclose(logits, ref_f32, atol=5e-2, rtol=5e-2), \
            f"f32-ref mismatch (cfg {cfg_i})"
        assert jnp.allclose(logits, logits2, atol=1e-5), \
            f"logits mismatch across paths (cfg {cfg_i})"

        ref_loss, ref_acc = _reference_loss_acc(logits2, targets)
        assert jnp.allclose(loss, ref_loss, atol=1e-4, rtol=1e-4), \
            f"loss mismatch (cfg {cfg_i})"
        assert jnp.allclose(acc, ref_acc, atol=1e-6), f"accuracy mismatch (cfg {cfg_i})"
        assert bool(jnp.isfinite(loss)) and bool(jnp.isfinite(acc))

    print("KERNEL_OK")
</pallas_src>

<mosaic_0001>
module attributes {stable_mosaic.version = 11 : i64} {
  func.func @_mlp_head_kernel(%arg0: i32, %arg1: memref<8x128xbf16, #tpu.memory_space<vmem>>, %arg2: memref<128x512xbf16, #tpu.memory_space<vmem>>, %arg3: memref<1x512xf32, #tpu.memory_space<vmem>>, %arg4: memref<512x128xbf16, #tpu.memory_space<vmem>>, %arg5: memref<1x128xf32, #tpu.memory_space<vmem>>, %arg6: memref<8x128xf32, #tpu.memory_space<vmem>>) attributes {dimension_semantics = [#tpu.dimension_semantics<parallel>], iteration_bounds = array<i64: 1>, scalar_prefetch = 0 : i64, scratch_operands = 0 : i64, tpu.core_type = #tpu.core_type<tc>, window_params = [{transform_indices = @transform_0, window_bounds = array<i64: 8, 128>}, {pipeline_mode = #tpu.pipeline_mode<synchronous>, transform_indices = @transform_1, window_bounds = array<i64: 128, 512>}, {pipeline_mode = #tpu.pipeline_mode<synchronous>, transform_indices = @transform_2, window_bounds = array<i64: 1, 512>}, {pipeline_mode = #tpu.pipeline_mode<synchronous>, transform_indices = @transform_3, window_bounds = array<i64: 512, 128>}, {pipeline_mode = #tpu.pipeline_mode<synchronous>, transform_indices = @transform_4, window_bounds = array<i64: 1, 128>}, {transform_indices = @transform_5, window_bounds = array<i64: 8, 128>}]} {
    %c0 = arith.constant 0 : index
    %c0_0 = arith.constant 0 : index
    %0 = vector.load %arg1[%c0, %c0_0] : memref<8x128xbf16, #tpu.memory_space<vmem>>, vector<8x128xbf16>
    %c0_1 = arith.constant 0 : index
    %c0_2 = arith.constant 0 : index
    %1 = vector.load %arg2[%c0_1, %c0_2] : memref<128x512xbf16, #tpu.memory_space<vmem>>, vector<128x512xbf16>
    %cst = arith.constant dense<0.000000e+00> : vector<8x512xf32>
    %2 = tpu.matmul %0, %1, %cst {dimension_numbers = #tpu.dot_dimension_numbers<[1], [0], [0], [1], [0, 0, 1, 1], [], []>} : vector<8x128xbf16>, vector<128x512xbf16>, vector<8x512xf32> -> vector<8x512xf32>
    %c0_3 = arith.constant 0 : index
    %c0_4 = arith.constant 0 : index
    %3 = vector.load %arg3[%c0_3, %c0_4] : memref<1x512xf32, #tpu.memory_space<vmem>>, vector<1x512xf32>
    %4 = vector.broadcast %3 : vector<1x512xf32> to vector<8x512xf32>
    %5 = arith.addf %2, %4 : vector<8x512xf32>
    %cst_5 = arith.constant 0.000000e+00 : f32
    %6 = vector.broadcast %cst_5 : f32 to vector<8x512xf32>
    %7 = arith.maximumf %5, %6 : vector<8x512xf32>
    %8 = arith.truncf %7 : vector<8x512xf32> to vector<8x512xbf16>
    %c0_6 = arith.constant 0 : index
    %c0_7 = arith.constant 0 : index
    %9 = vector.load %arg4[%c0_6, %c0_7] : memref<512x128xbf16, #tpu.memory_space<vmem>>, vector<512x128xbf16>
    %cst_8 = arith.constant dense<0.000000e+00> : vector<8x128xf32>
    %10 = tpu.matmul %8, %9, %cst_8 {dimension_numbers = #tpu.dot_dimension_numbers<[1], [0], [0], [1], [0, 0, 1, 1], [], []>} : vector<8x512xbf16>, vector<512x128xbf16>, vector<8x128xf32> -> vector<8x128xf32>
    %c0_9 = arith.constant 0 : index
    %c0_10 = arith.constant 0 : index
    %11 = vector.load %arg5[%c0_9, %c0_10] : memref<1x128xf32, #tpu.memory_space<vmem>>, vector<1x128xf32>
    %12 = vector.broadcast %11 : vector<1x128xf32> to vector<8x128xf32>
    %13 = arith.addf %10, %12 : vector<8x128xf32>
    %c0_11 = arith.constant 0 : index
    %c0_12 = arith.constant 0 : index
    %14 = vector.load %arg6[%c0_11, %c0_12] : memref<8x128xf32, #tpu.memory_space<vmem>>, vector<8x128xf32>
    tpu.vector_store %arg6[%c0_11, %c0_12], %13 {strides = array<i32>} : memref<8x128xf32, #tpu.memory_space<vmem>>, vector<8x128xf32>,
    return
  }
  func.func @transform_0(%arg0: i32) -> (i32, i32) {
    %c0_i32 = arith.constant 0 : i32
    %c0_i32_0 = arith.constant 0 : i32
    return %arg0, %c0_i32 : i32, i32
  }
  func.func @transform_1(%arg0: i32) -> (i32, i32) {
    %c0_i32 = arith.constant 0 : i32
    %c0_i32_0 = arith.constant 0 : i32
    %c0_i32_1 = arith.constant 0 : i32
    return %c0_i32, %c0_i32_0 : i32, i32
  }
  func.func @transform_2(%arg0: i32) -> (i32, i32) {
    %c0_i32 = arith.constant 0 : i32
    %c0_i32_0 = arith.constant 0 : i32
    %c0_i32_1 = arith.constant 0 : i32
    return %c0_i32, %c0_i32_0 : i32, i32
  }
  func.func @transform_3(%arg0: i32) -> (i32, i32) {
    %c0_i32 = arith.constant 0 : i32
    %c0_i32_0 = arith.constant 0 : i32
    %c0_i32_1 = arith.constant 0 : i32
    return %c0_i32, %c0_i32_0 : i32, i32
  }
  func.func @transform_4(%arg0: i32) -> (i32, i32) {
    %c0_i32 = arith.constant 0 : i32
    %c0_i32_0 = arith.constant 0 : i32
    %c0_i32_1 = arith.constant 0 : i32
    return %c0_i32, %c0_i32_0 : i32, i32
  }
  func.func @transform_5(%arg0: i32) -> (i32, i32) {
    %c0_i32 = arith.constant 0 : i32
    %c0_i32_0 = arith.constant 0 : i32
    return %arg0, %c0_i32 : i32, i32
  }
}

</mosaic_0001>

<llo_original>
// kernel: tpu_custom_call.1
$region0: #{tpu_custom_call.1}
  #allocation0 [shape = 'u32[]', space=smem, size = 0x4, offset = 0x4, fixed_abs, tag = 'smem constant byte address 0x4 - core index']
  #allocation1 [shape = 'u32[144,128]{1,0:T(1,128)}', space=vmem, size = 0x12000, scoped, tag = 'internal scratch']
  %s0 = inlined_call_operand.hbm [shape: bf16[8,128], index: 0, kind: input, shape index: {}]
  %s1 = inlined_call_operand.hbm [shape: bf16[128,512], index: 1, kind: input, shape index: {}]
  %s2 = inlined_call_operand.vmem [shape: f32[1,512], index: 2, kind: input, shape index: {}]
  %s3 = inlined_call_operand.hbm [shape: bf16[512,128], index: 3, kind: input, shape index: {}]
  %s4 = inlined_call_operand.vmem [shape: f32[1,128], index: 4, kind: input, shape index: {}]
  %s5 = inlined_call_operand.hbm [shape: f32[8,128], index: 5, kind: output, shape index: {}]
  %s6 = sld [smem:[#allocation0]]
  $region42: #{tpu_custom_call.1} parent=0
    _
  %s8 = ssub.s32 1, %s6
  %s9 = scalar_select 0, %s8, %s6
  $region1: #{tpu_custom_call.1} parent=0
    #allocation2 [shape = 'u8[2048]{0}', space=vmem, size = 0x800, scoped, tag = 'input window, operand 0, single buffered']
    #allocation3 [shape = 's32[1]{0}', space=sflag, size = 0x4, scoped, tag = 'scoped memory for tpu_custom_call.1']
    #allocation4 [shape = 's32[1]{0}', space=sflag, size = 0x4, scoped, tag = 'scoped memory for tpu_custom_call.1']
    #allocation5 [shape = 'u8[131072]{0}', space=vmem, size = 0x20000, scoped, tag = 'input window, operand 1, single buffered']
    #allocation6 [shape = 's32[1]{0}', space=sflag, size = 0x4, scoped, tag = 'scoped memory for tpu_custom_call.1']
    #allocation7 [shape = 'u8[131072]{0}', space=vmem, size = 0x20000, scoped, tag = 'input window, operand 3, single buffered']
    #allocation8 [shape = 'u8[4096]{0}', space=vmem, size = 0x1000, scoped, tag = 'output window, operand 0, single buffered']
    %10 = vsyncpa [#allocation3], 0
    %11 = vsyncpa [#allocation6], 0
    %12 = vsyncpa [#allocation4], 0
    // Predicated region
    $region2: #{tpu_custom_call.1} parent=1 // pred_check
      _
    $region3: #{tpu_custom_call.1} parent=1 // pred_check_branch
      %14 = sbr.rel (0) target = $region5
    $region4: #{tpu_custom_call.1} parent=1 // pred_region
      %s16 = ssub.s32 64, 64
      %17 = vsyncadd [#allocation3], %s16
      %s19 = sshll.u32 [#allocation2], 4
      %s20 = int_to_ptr.vmem [resolvable:$true] %s19
      %22 = dma.hbm_to_vmem [thread:$0]  %s0, 64, %s20, [#allocation3]
    $region5: #{tpu_custom_call.1} parent=1 // pred_fallthru
      _
    // Predicated region
    $region6: #{tpu_custom_call.1} parent=1 // pred_check
      _
    $region7: #{tpu_custom_call.1} parent=1 // pred_check_branch
      %24 = sbr.rel (0) target = $region9
    $region8: #{tpu_custom_call.1} parent=1 // pred_region
      %s26 = ssub.s32 4096, 4096
      %27 = vsyncadd [#allocation6], %s26
      %s28 = sshll.u32 [#allocation5], 4
      %s29 = int_to_ptr.vmem [resolvable:$true] %s28
      %34 = dma.hbm_to_vmem [thread:$0]  %s1, 4096, %s29, [#allocation6], 256, 256, 16
    $region9: #{tpu_custom_call.1} parent=1 // pred_fallthru
      _
    // Predicated region
    $region10: #{tpu_custom_call.1} parent=1 // pred_check
      _
    $region11: #{tpu_custom_call.1} parent=1 // pred_check_branch
      %36 = sbr.rel (0) target = $region13
    $region12: #{tpu_custom_call.1} parent=1 // pred_region
      _
    $region13: #{tpu_custom_call.1} parent=1 // pred_fallthru
      _
    // Predicated region
    $region14: #{tpu_custom_call.1} parent=1 // pred_check
      _
    $region15: #{tpu_custom_call.1} parent=1 // pred_check_branch
      %38 = sbr.rel (0) target = $region17
    $region16: #{tpu_custom_call.1} parent=1 // pred_region
      %s40 = ssub.s32 4096, 4096
      %41 = vsyncadd [#allocation6], %s40
      %s42 = sshll.u32 [#allocation7], 4
      %s43 = int_to_ptr.vmem [resolvable:$true] %s42
      %48 = dma.hbm_to_vmem [thread:$0]  %s3, 4096, %s43, [#allocation6], 64, 64, 4
    $region17: #{tpu_custom_call.1} parent=1 // pred_fallthru
      _
    // Predicated region
    $region18: #{tpu_custom_call.1} parent=1 // pred_check
      _
    $region19: #{tpu_custom_call.1} parent=1 // pred_check_branch
      %50 = sbr.rel (0) target = $region21
    $region20: #{tpu_custom_call.1} parent=1 // pred_region
      _
    $region21: #{tpu_custom_call.1} parent=1 // pred_fallthru
      _
    // Predicated region
    $region22: #{tpu_custom_call.1} parent=1 // pred_check
      _
    $region23: #{tpu_custom_call.1} parent=1 // pred_check_branch
      %52 = sbr.rel (0) target = $region25
    $region24: #{tpu_custom_call.1} parent=1 // pred_region
      %53 = dma.done [#allocation3], 64
    $region25: #{tpu_custom_call.1} parent=1 // pred_fallthru
      _
    // Predicated region
    $region26: #{tpu_custom_call.1} parent=1 // pred_check
      _
    $region27: #{tpu_custom_call.1} parent=1 // pred_check_branch
      %55 = sbr.rel (0) target = $region29
    $region28: #{tpu_custom_call.1} parent=1 // pred_region
      %56 = dma.done [#allocation6], 4096
    $region29: #{tpu_custom_call.1} parent=1 // pred_fallthru
      _
    // Predicated region
    $region30: #{tpu_custom_call.1} parent=1 // pred_check
      _
    $region31: #{tpu_custom_call.1} parent=1 // pred_check_branch
      %58 = sbr.rel (0) target = $region33
    $region32: #{tpu_custom_call.1} parent=1 // pred_region
      %59 = dma.done [#allocation6], 4096
    $region33: #{tpu_custom_call.1} parent=1 // pred_fallthru
      _
    %v61 = vld [vmem:[#allocation2] sm:$0xf]
    %v62 = vld [vmem:[#allocation5] sm:$0xff]
    %v63 = vld [vmem:[#allocation5 + $0x8] sm:$0xff]
    %v64 = vld [vmem:[#allocation5 + $0x10] sm:$0xff]
    %v65 = vld [vmem:[#allocation5 + $0x18] sm:$0xff]
    %v66 = vld [vmem:[#allocation5 + $0x20] sm:$0xff]
    %v67 = vld [vmem:[#allocation5 + $0x28] sm:$0xff]
    %v68 = vld [vmem:[#allocation5 + $0x30] sm:$0xff]
    %v69 = vld [vmem:[#allocation5 + $0x38] sm:$0xff]
    %v70 = vld [vmem:[#allocation5 + $0x40] sm:$0xff]
    %v71 = vld [vmem:[#allocation5 + $0x48] sm:$0xff]
    %v72 = vld [vmem:[#allocation5 + $0x50] sm:$0xff]
    %v73 = vld [vmem:[#allocation5 + $0x58] sm:$0xff]
    %v74 = vld [vmem:[#allocation5 + $0x60] sm:$0xff]
    %v75 = vld [vmem:[#allocation5 + $0x68] sm:$0xff]
    %v76 = vld [vmem:[#allocation5 + $0x70] sm:$0xff]
    %v77 = vld [vmem:[#allocation5 + $0x78] sm:$0xff]
    %v78 = vld [vmem:[#allocation5 + $0x80] sm:$0xff]
    %v79 = vld [vmem:[#allocation5 + $0x88] sm:$0xff]
    %v80 = vld [vmem:[#allocation5 + $0x90] sm:$0xff]
    %v81 = vld [vmem:[#allocation5 + $0x98] sm:$0xff]
    %v82 = vld [vmem:[#allocation5 + $0xa0] sm:$0xff]
    %v83 = vld [vmem:[#allocation5 + $0xa8] sm:$0xff]
    %v84 = vld [vmem:[#allocation5 + $0xb0] sm:$0xff]
    %v85 = vld [vmem:[#allocation5 + $0xb8] sm:$0xff]
    %v86 = vld [vmem:[#allocation5 + $0xc0] sm:$0xff]
    %v87 = vld [vmem:[#allocation5 + $0xc8] sm:$0xff]
    %v88 = vld [vmem:[#allocation5 + $0xd0] sm:$0xff]
    %v89 = vld [vmem:[#allocation5 + $0xd8] sm:$0xff]
    %v90 = vld [vmem:[#allocation5 + $0xe0] sm:$0xff]
    %v91 = vld [vmem:[#allocation5 + $0xe8] sm:$0xff]
    %v92 = vld [vmem:[#allocation5 + $0xf0] sm:$0xff]
    %v93 = vld [vmem:[#allocation5 + $0xf8] sm:$0xff]
    %v94 = vld [vmem:[%s2] sm:$0xf]
    %v96 = vlaneseq
    %v97 = vshrl.u32 %v96, 7
    %v98 = vsub.s32 0, %v97
    %v99 = vrot.slane %v94, %v98
    %v100 = vlaneseq
    %v101 = vshrl.u32 %v100, 7
    %v102 = vsub.s32 1, %v101
    %v103 = vrot.slane %v94, %v102
    %v104 = vlaneseq
    %v105 = vshrl.u32 %v104, 7
    %v106 = vsub.s32 2, %v105
    %v107 = vrot.slane %v94, %v106
    %v108 = vlaneseq
    %v109 = vshrl.u32 %v108, 7
    %v110 = vsub.s32 3, %v109
    %v111 = vrot.slane %v94, %v110
    %v148 = vunpack.c.l.b16 %v62
    %v149 = vunpack.c.h.b16 %v62
    %v150 = vunpack.c.l.b16 %v63
    %v151 = vunpack.c.h.b16 %v63
    %v152 = vunpack.c.l.b16 %v64
    %v153 = vunpack.c.h.b16 %v64
    %v154 = vunpack.c.l.b16 %v65
    %v155 = vunpack.c.h.b16 %v65
    %v156 = vunpack.c.l.b16 %v66
    %v157 = vunpack.c.h.b16 %v66
    %v158 = vunpack.c.l.b16 %v67
    %v159 = vunpack.c.h.b16 %v67
    %v160 = vunpack.c.l.b16 %v68
    %v161 = vunpack.c.h.b16 %v68
    %v162 = vunpack.c.l.b16 %v69
    %v163 = vunpack.c.h.b16 %v69
    %v164 = vunpack.c.l.b16 %v70
    %v165 = vunpack.c.h.b16 %v70
    %v166 = vunpack.c.l.b16 %v71
    %v167 = vunpack.c.h.b16 %v71
    %v168 = vunpack.c.l.b16 %v72
    %v169 = vunpack.c.h.b16 %v72
    %v170 = vunpack.c.l.b16 %v73
    %v171 = vunpack.c.h.b16 %v73
    %v172 = vunpack.c.l.b16 %v74
    %v173 = vunpack.c.h.b16 %v74
    %v174 = vunpack.c.l.b16 %v75
    %v175 = vunpack.c.h.b16 %v75
    %v176 = vunpack.c.l.b16 %v76
    %v177 = vunpack.c.h.b16 %v76
    %v178 = vunpack.c.l.b16 %v77
    %v179 = vunpack.c.h.b16 %v77
    %v180 = vunpack.c.l.b16 %v78
    %v181 = vunpack.c.h.b16 %v78
    %v182 = vunpack.c.l.b16 %v79
    %v183 = vunpack.c.h.b16 %v79
    %v184 = vunpack.c.l.b16 %v80
    %v185 = vunpack.c.h.b16 %v80
    %v186 = vunpack.c.l.b16 %v81
    %v187 = vunpack.c.h.b16 %v81
    %v188 = vunpack.c.l.b16 %v82
    %v189 = vunpack.c.h.b16 %v82
    %v190 = vunpack.c.l.b16 %v83
    %v191 = vunpack.c.h.b16 %v83
    %v192 = vunpack.c.l.b16 %v84
    %v193 = vunpack.c.h.b16 %v84
    %v194 = vunpack.c.l.b16 %v85
    %v195 = vunpack.c.h.b16 %v85
    %v196 = vunpack.c.l.b16 %v86
    %v197 = vunpack.c.h.b16 %v86
    %v198 = vunpack.c.l.b16 %v87
    %v199 = vunpack.c.h.b16 %v87
    %v200 = vunpack.c.l.b16 %v88
    %v201 = vunpack.c.h.b16 %v88
    %v202 = vunpack.c.l.b16 %v89
    %v203 = vunpack.c.h.b16 %v89
    %v204 = vunpack.c.l.b16 %v90
    %v205 = vunpack.c.h.b16 %v90
    %v206 = vunpack.c.l.b16 %v91
    %v207 = vunpack.c.h.b16 %v91
    %v208 = vunpack.c.l.b16 %v92
    %v209 = vunpack.c.h.b16 %v92
    %v210 = vunpack.c.l.b16 %v93
    %v211 = vunpack.c.h.b16 %v93
    %v212 = vpack.c.b16 %v152, %v148
    %v213 = vpack.c.b16 %v153, %v149
    %v214 = vpack.c.b16 %v154, %v150
    %v215 = vpack.c.b16 %v155, %v151
    %v216 = vpack.c.b16 %v160, %v156
    %v217 = vpack.c.b16 %v161, %v157
    %v218 = vpack.c.b16 %v162, %v158
    %v219 = vpack.c.b16 %v163, %v159
    %v220 = vpack.c.b16 %v168, %v164
    %v221 = vpack.c.b16 %v169, %v165
    %v222 = vpack.c.b16 %v170, %v166
    %v223 = vpack.c.b16 %v171, %v167
    %v224 = vpack.c.b16 %v176, %v172
    %v225 = vpack.c.b16 %v177, %v173
    %v226 = vpack.c.b16 %v178, %v174
    %v227 = vpack.c.b16 %v179, %v175
    %v228 = vpack.c.b16 %v184, %v180
    %v229 = vpack.c.b16 %v185, %v181
    %v230 = vpack.c.b16 %v186, %v182
    %v231 = vpack.c.b16 %v187, %v183
    %v232 = vpack.c.b16 %v192, %v188
    %v233 = vpack.c.b16 %v193, %v189
    %v234 = vpack.c.b16 %v194, %v190
    %v235 = vpack.c.b16 %v195, %v191
    %v236 = vpack.c.b16 %v200, %v196
    %v237 = vpack.c.b16 %v201, %v197
    %v238 = vpack.c.b16 %v202, %v198
    %v239 = vpack.c.b16 %v203, %v199
    %v240 = vpack.c.b16 %v208, %v204
    %v241 = vpack.c.b16 %v209, %v205
    %v242 = vpack.c.b16 %v210, %v206
    %v243 = vpack.c.b16 %v211, %v207
    %276 = vmatprep.subr.bf16.mxu0 %v213
    %277 = vmatpush1.bf16.msra.mxu0 %v212
    %278 = vmatprep.subr.bf16.mxu0 %v217
    %279 = vmatpush1.bf16.msra.mxu0 %v216
    %280 = vmatprep.subr.bf16.mxu0 %v221
    %281 = vmatpush1.bf16.msra.mxu0 %v220
    %282 = vmatprep.subr.bf16.mxu0 %v225
    %283 = vmatpush1.bf16.msra.mxu0 %v224
    %284 = vmatprep.subr.bf16.mxu0 %v229
    %285 = vmatpush1.bf16.msra.mxu0 %v228
    %286 = vmatprep.subr.bf16.mxu0 %v233
    %287 = vmatpush1.bf16.msra.mxu0 %v232
    %288 = vmatprep.subr.bf16.mxu0 %v237
    %289 = vmatpush1.bf16.msra.mxu0 %v236
    %290 = vmatprep.subr.bf16.mxu0 %v241
    %291 = vmatpush1.bf16.msra.mxu0 %v240
    %292 = vmatprep.subr.bf16.mxu0 0
    %293 = vmatpush1.bf16.msra.mxu0 0
    %294 = vmatprep.subr.bf16.mxu0 0
    %295 = vmatpush1.bf16.msra.mxu0 0
    %296 = vmatprep.subr.bf16.mxu0 0
    %297 = vmatpush1.bf16.msra.mxu0 0
    %298 = vmatprep.subr.bf16.mxu0 0
    %299 = vmatpush1.bf16.msra.mxu0 0
    %300 = vmatprep.subr.bf16.mxu0 0
    %301 = vmatpush1.bf16.msra.mxu0 0
    %302 = vmatprep.subr.bf16.mxu0 0
    %303 = vmatpush1.bf16.msra.mxu0 0
    %304 = vmatprep.subr.bf16.mxu0 0
    %305 = vmatpush1.bf16.msra.mxu0 0
    %306 = vmatprep.subr.bf16.mxu0 0
    %307 = vmatpush1.bf16.msra.mxu0 0
    %308 = vmatprep.mubr.bf16.mxu0 0
    %309 = vmatmul.mubr.bf16.gmra.mrb[0].mxu0 %v61
    %v310 = vpop.f32.mrb[0].mxu0
    %v311 = vadd.f32 %v99, %v310
    %v312 = vpop.f32.mrb[0].mxu0
    %v313 = vadd.f32 %v103, %v312
    %v314 = vpop.f32.mrb[0].mxu0
    %v315 = vpop.f32.mrb[0].mxu0
    %316 = vdwg.mxu0
    %317 = vmatprep.subr.bf16.mxu0 %v215
    %318 = vmatpush1.bf16.msra.mxu0 %v214
    %319 = vmatprep.subr.bf16.mxu0 %v219
    %320 = vmatpush1.bf16.msra.mxu0 %v218
    %321 = vmatprep.subr.bf16.mxu0 %v223
    %322 = vmatpush1.bf16.msra.mxu0 %v222
    %323 = vmatprep.subr.bf16.mxu0 %v227
    %324 = vmatpush1.bf16.msra.mxu0 %v226
    %325 = vmatprep.subr.bf16.mxu0 %v231
    %326 = vmatpush1.bf16.msra.mxu0 %v230
    %327 = vmatprep.subr.bf16.mxu0 %v235
    %328 = vmatpush1.bf16.msra.mxu0 %v234
    %329 = vmatprep.subr.bf16.mxu0 %v239
    %330 = vmatpush1.bf16.msra.mxu0 %v238
    %331 = vmatprep.subr.bf16.mxu0 %v243
    %332 = vmatpush1.bf16.msra.mxu0 %v242
    %333 = vmatprep.subr.bf16.mxu0 0
    %334 = vmatpush1.bf16.msra.mxu0 0
    %335 = vmatprep.subr.bf16.mxu0 0
    %336 = vmatpush1.bf16.msra.mxu0 0
    %337 = vmatprep.subr.bf16.mxu0 0
    %338 = vmatpush1.bf16.msra.mxu0 0
    %339 = vmatprep.subr.bf16.mxu0 0
    %340 = vmatpush1.bf16.msra.mxu0 0
    %341 = vmatprep.subr.bf16.mxu0 0
    %342 = vmatpush1.bf16.msra.mxu0 0
    %343 = vmatprep.subr.bf16.mxu0 0
    %344 = vmatpush1.bf16.msra.mxu0 0
    %345 = vmatprep.subr.bf16.mxu0 0
    %346 = vmatpush1.bf16.msra.mxu0 0
    %347 = vmatprep.subr.bf16.mxu0 0
    %348 = vmatpush1.bf16.msra.mxu0 0
    %349 = vmatprep.mubr.bf16.mxu0 0
    %350 = vmatmul.mubr.bf16.gmra.mrb[0].mxu0 %v61
    %v351 = vpop.f32.mrb[0].mxu0
    %v352 = vadd.f32 %v107, %v351
    %v353 = vpop.f32.mrb[0].mxu0
    %v354 = vadd.f32 %v111, %v353
    %v355 = vpop.f32.mrb[0].mxu0
    %v356 = vpop.f32.mrb[0].mxu0
    %357 = vdwg.mxu0
    %v358 = vmax.f32 %v311, 0.0
    %v359 = vmax.f32 %v313, 0.0
    %v360 = vmax.f32 %v352, 0.0
    %v361 = vmax.f32 %v354, 0.0
    %v362 = vpack.c.bf16 %v358, %v358
    %v363 = vpack.c.bf16 %v359, %v359
    %v364 = vpack.c.bf16 %v360, %v360
    %v365 = vpack.c.bf16 %v361, %v361
    %v366 = vld [vmem:[#allocation7] sm:$0xf]
    %v367 = vld [vmem:[#allocation7 + $0x4] sm:$0xf]
    %v368 = vld [vmem:[#allocation7 + $0x8] sm:$0xf]
    %v369 = vld [vmem:[#allocation7 + $0xc] sm:$0xf]
    %v370 = vld [vmem:[#allocation7 + $0x10] sm:$0xf]
    %v371 = vld [vmem:[#allocation7 + $0x14] sm:$0xf]
    %v372 = vld [vmem:[#allocation7 + $0x18] sm:$0xf]
    %v373 = vld [vmem:[#allocation7 + $0x1c] sm:$0xf]
    %v374 = vld [vmem:[#allocation7 + $0x20] sm:$0xf]
    %v375 = vld [vmem:[#allocation7 + $0x24] sm:$0xf]
    %v376 = vld [vmem:[#allocation7 + $0x28] sm:$0xf]
    %v377 = vld [vmem:[#allocation7 + $0x2c] sm:$0xf]
    %v378 = vld [vmem:[#allocation7 + $0x30] sm:$0xf]
    %v379 = vld [vmem:[#allocation7 + $0x34] sm:$0xf]
    %v380 = vld [vmem:[#allocation7 + $0x38] sm:$0xf]
    %v381 = vld [vmem:[#allocation7 + $0x3c] sm:$0xf]
    %v382 = vld [vmem:[#allocation7 + $0x40] sm:$0xf]
    %v383 = vld [vmem:[#allocation7 + $0x44] sm:$0xf]
    %v384 = vld [vmem:[#allocation7 + $0x48] sm:$0xf]
    %v385 = vld [vmem:[#allocation7 + $0x4c] sm:$0xf]
    %v386 = vld [vmem:[#allocation7 + $0x50] sm:$0xf]
    %v387 = vld [vmem:[#allocation7 + $0x54] sm:$0xf]
    %v388 = vld [vmem:[#allocation7 + $0x58] sm:$0xf]
    %v389 = vld [vmem:[#allocation7 + $0x5c] sm:$0xf]
    %v390 = vld [vmem:[#allocation7 + $0x60] sm:$0xf]
    %v391 = vld [vmem:[#allocation7 + $0x64] sm:$0xf]
    %v392 = vld [vmem:[#allocation7 + $0x68] sm:$0xf]
    %v393 = vld [vmem:[#allocation7 + $0x6c] sm:$0xf]
    %v394 = vld [vmem:[#allocation7 + $0x70] sm:$0xf]
    %v395 = vld [vmem:[#allocation7 + $0x74] sm:$0xf]
    %v396 = vld [vmem:[#allocation7 + $0x78] sm:$0xf]
    %v397 = vld [vmem:[#allocation7 + $0x7c] sm:$0xf]
    %v398 = vld [vmem:[#allocation7 + $0x80] sm:$0xf]
    %v399 = vld [vmem:[#allocation7 + $0x84] sm:$0xf]
    %v400 = vld [vmem:[#allocation7 + $0x88] sm:$0xf]
    %v401 = vld [vmem:[#allocation7 + $0x8c] sm:$0xf]
    %v402 = vld [vmem:[#allocation7 + $0x90] sm:$0xf]
    %v403 = vld [vmem:[#allocation7 + $0x94] sm:$0xf]
    %v404 = vld [vmem:[#allocation7 + $0x98] sm:$0xf]
    %v405 = vld [vmem:[#allocation7 + $0x9c] sm:$0xf]
    %v406 = vld [vmem:[#allocation7 + $0xa0] sm:$0xf]
    %v407 = vld [vmem:[#allocation7 + $0xa4] sm:$0xf]
    %v408 = vld [vmem:[#allocation7 + $0xa8] sm:$0xf]
    %v409 = vld [vmem:[#allocation7 + $0xac] sm:$0xf]
    %v410 = vld [vmem:[#allocation7 + $0xb0] sm:$0xf]
    %v411 = vld [vmem:[#allocation7 + $0xb4] sm:$0xf]
    %v412 = vld [vmem:[#allocation7 + $0xb8] sm:$0xf]
    %v413 = vld [vmem:[#allocation7 + $0xbc] sm:$0xf]
    %v414 = vld [vmem:[#allocation7 + $0xc0] sm:$0xf]
    %v415 = vld [vmem:[#allocation7 + $0xc4] sm:$0xf]
    %v416 = vld [vmem:[#allocation7 + $0xc8] sm:$0xf]
    %v417 = vld [vmem:[#allocation7 + $0xcc] sm:$0xf]
    %v418 = vld [vmem:[#allocation7 + $0xd0] sm:$0xf]
    %v419 = vld [vmem:[#allocation7 + $0xd4] sm:$0xf]
    %v420 = vld [vmem:[#allocation7 + $0xd8] sm:$0xf]
    %v421 = vld [vmem:[#allocation7 + $0xdc] sm:$0xf]
    %v422 = vld [vmem:[#allocation7 + $0xe0] sm:$0xf]
    %v423 = vld [vmem:[#allocation7 + $0xe4] sm:$0xf]
    %v424 = vld [vmem:[#allocation7 + $0xe8] sm:$0xf]
    %v425 = vld [vmem:[#allocation7 + $0xec] sm:$0xf]
    %v426 = vld [vmem:[#allocation7 + $0xf0] sm:$0xf]
    %v427 = vld [vmem:[#allocation7 + $0xf4] sm:$0xf]
    %v428 = vld [vmem:[#allocation7 + $0xf8] sm:$0xf]
    %v429 = vld [vmem:[#allocation7 + $0xfc] sm:$0xf]
    %v430 = vld [vmem:[%s4] sm:$0x1]
    %v432 = vlaneseq
    %v433 = vshrl.u32 %v432, 7
    %v434 = vsub.s32 0, %v433
    %v435 = vrot.slane %v430, %v434
    %v501 = vunpack.c.l.b16 %v366
    %v502 = vunpack.c.l.b16 %v367
    %v503 = vunpack.c.l.b16 %v368
    %v504 = vunpack.c.l.b16 %v369
    %v505 = vunpack.c.l.b16 %v370
    %v506 = vunpack.c.l.b16 %v371
    %v507 = vunpack.c.l.b16 %v372
    %v508 = vunpack.c.l.b16 %v373
    %v509 = vunpack.c.l.b16 %v374
    %v510 = vunpack.c.l.b16 %v375
    %v511 = vunpack.c.l.b16 %v376
    %v512 = vunpack.c.l.b16 %v377
    %v513 = vunpack.c.l.b16 %v378
    %v514 = vunpack.c.l.b16 %v379
    %v515 = vunpack.c.l.b16 %v380
    %v516 = vunpack.c.l.b16 %v381
    %v517 = vunpack.c.l.b16 %v382
    %v518 = vunpack.c.l.b16 %v383
    %v519 = vunpack.c.l.b16 %v384
    %v520 = vunpack.c.l.b16 %v385
    %v521 = vunpack.c.l.b16 %v386
    %v522 = vunpack.c.l.b16 %v387
    %v523 = vunpack.c.l.b16 %v388
    %v524 = vunpack.c.l.b16 %v389
    %v525 = vunpack.c.l.b16 %v390
    %v526 = vunpack.c.l.b16 %v391
    %v527 = vunpack.c.l.b16 %v392
    %v528 = vunpack.c.l.b16 %v393
    %v529 = vunpack.c.l.b16 %v394
    %v530 = vunpack.c.l.b16 %v395
    %v531 = vunpack.c.l.b16 %v396
    %v532 = vunpack.c.l.b16 %v397
    %v533 = vunpack.c.l.b16 %v398
    %v534 = vunpack.c.l.b16 %v399
    %v535 = vunpack.c.l.b16 %v400
    %v536 = vunpack.c.l.b16 %v401
    %v537 = vunpack.c.l.b16 %v402
    %v538 = vunpack.c.l.b16 %v403
    %v539 = vunpack.c.l.b16 %v404
    %v540 = vunpack.c.l.b16 %v405
    %v541 = vunpack.c.l.b16 %v406
    %v542 = vunpack.c.l.b16 %v407
    %v543 = vunpack.c.l.b16 %v408
    %v544 = vunpack.c.l.b16 %v409
    %v545 = vunpack.c.l.b16 %v410
    %v546 = vunpack.c.l.b16 %v411
    %v547 = vunpack.c.l.b16 %v412
    %v548 = vunpack.c.l.b16 %v413
    %v549 = vunpack.c.l.b16 %v414
    %v550 = vunpack.c.l.b16 %v415
    %v551 = vunpack.c.l.b16 %v416
    %v552 = vunpack.c.l.b16 %v417
    %v553 = vunpack.c.l.b16 %v418
    %v554 = vunpack.c.l.b16 %v419
    %v555 = vunpack.c.l.b16 %v420
    %v556 = vunpack.c.l.b16 %v421
    %v557 = vunpack.c.l.b16 %v422
    %v558 = vunpack.c.l.b16 %v423
    %v559 = vunpack.c.l.b16 %v424
    %v560 = vunpack.c.l.b16 %v425
    %v561 = vunpack.c.l.b16 %v426
    %v562 = vunpack.c.l.b16 %v427
    %v563 = vunpack.c.l.b16 %v428
    %v564 = vunpack.c.l.b16 %v429
    %v565 = vpack.c.b16 %v502, %v501
    %v566 = vpack.c.b16 %v504, %v503
    %v567 = vpack.c.b16 %v506, %v505
    %v568 = vpack.c.b16 %v508, %v507
    %v569 = vpack.c.b16 %v510, %v509
    %v570 = vpack.c.b16 %v512, %v511
    %v571 = vpack.c.b16 %v514, %v513
    %v572 = vpack.c.b16 %v516, %v515
    %v573 = vpack.c.b16 %v518, %v517
    %v574 = vpack.c.b16 %v520, %v519
    %v575 = vpack.c.b16 %v522, %v521
    %v576 = vpack.c.b16 %v524, %v523
    %v577 = vpack.c.b16 %v526, %v525
    %v578 = vpack.c.b16 %v528, %v527
    %v579 = vpack.c.b16 %v530, %v529
    %v580 = vpack.c.b16 %v532, %v531
    %v581 = vpack.c.b16 %v534, %v533
    %v582 = vpack.c.b16 %v536, %v535
    %v583 = vpack.c.b16 %v538, %v537
    %v584 = vpack.c.b16 %v540, %v539
    %v585 = vpack.c.b16 %v542, %v541
    %v586 = vpack.c.b16 %v544, %v543
    %v587 = vpack.c.b16 %v546, %v545
    %v588 = vpack.c.b16 %v548, %v547
    %v589 = vpack.c.b16 %v550, %v549
    %v590 = vpack.c.b16 %v552, %v551
    %v591 = vpack.c.b16 %v554, %v553
    %v592 = vpack.c.b16 %v556, %v555
    %v593 = vpack.c.b16 %v558, %v557
    %v594 = vpack.c.b16 %v560, %v559
    %v595 = vpack.c.b16 %v562, %v561
    %v596 = vpack.c.b16 %v564, %v563
    %629 = vmatprep.subr.bf16.mxu0 0
    %630 = vmatpush1.bf16.msra.mxu0 %v565
    %631 = vmatprep.subr.bf16.mxu0 0
    %632 = vmatpush1.bf16.msra.mxu0 %v566
    %633 = vmatprep.subr.bf16.mxu0 0
    %634 = vmatpush1.bf16.msra.mxu0 %v567
    %635 = vmatprep.subr.bf16.mxu0 0
    %636 = vmatpush1.bf16.msra.mxu0 %v568
    %637 = vmatprep.subr.bf16.mxu0 0
    %638 = vmatpush1.bf16.msra.mxu0 %v569
    %639 = vmatprep.subr.bf16.mxu0 0
    %640 = vmatpush1.bf16.msra.mxu0 %v570
    %641 = vmatprep.subr.bf16.mxu0 0
    %642 = vmatpush1.bf16.msra.mxu0 %v571
    %643 = vmatprep.subr.bf16.mxu0 0
    %644 = vmatpush1.bf16.msra.mxu0 %v572
    %645 = vmatprep.subr.bf16.mxu0 0
    %646 = vmatpush1.bf16.msra.mxu0 %v573
    %647 = vmatprep.subr.bf16.mxu0 0
    %648 = vmatpush1.bf16.msra.mxu0 %v574
    %649 = vmatprep.subr.bf16.mxu0 0
    %650 = vmatpush1.bf16.msra.mxu0 %v575
    %651 = vmatprep.subr.bf16.mxu0 0
    %652 = vmatpush1.bf16.msra.mxu0 %v576
    %653 = vmatprep.subr.bf16.mxu0 0
    %654 = vmatpush1.bf16.msra.mxu0 %v577
    %655 = vmatprep.subr.bf16.mxu0 0
    %656 = vmatpush1.bf16.msra.mxu0 %v578
    %657 = vmatprep.subr.bf16.mxu0 0
    %658 = vmatpush1.bf16.msra.mxu0 %v579
    %659 = vmatprep.subr.bf16.mxu0 0
    %660 = vmatpush1.bf16.msra.mxu0 %v580
    %661 = vmatprep.mubr.bf16.mxu0 %v363
    %662 = vmatmul.mubr.bf16.gmra.mrb[0].mxu0 %v362
    %v663 = vpop.f32.mrb[0].mxu0
    %v664 = vadd.f32 %v435, %v663
    %v665 = vpop.f32.mrb[0].mxu0
    %v666 = vpop.f32.mrb[0].mxu0
    %v667 = vpop.f32.mrb[0].mxu0
    %668 = vdwg.mxu0
    %669 = vmatprep.subr.bf16.mxu0 0
    %670 = vmatpush1.bf16.msra.mxu0 %v581
    %671 = vmatprep.subr.bf16.mxu0 0
    %672 = vmatpush1.bf16.msra.mxu0 %v582
    %673 = vmatprep.subr.bf16.mxu0 0
    %674 = vmatpush1.bf16.msra.mxu0 %v583
    %675 = vmatprep.subr.bf16.mxu0 0
    %676 = vmatpush1.bf16.msra.mxu0 %v584
    %677 = vmatprep.subr.bf16.mxu0 0
    %678 = vmatpush1.bf16.msra.mxu0 %v585
    %679 = vmatprep.subr.bf16.mxu0 0
    %680 = vmatpush1.bf16.msra.mxu0 %v586
    %681 = vmatprep.subr.bf16.mxu0 0
    %682 = vmatpush1.bf16.msra.mxu0 %v587
    %683 = vmatprep.subr.bf16.mxu0 0
    %684 = vmatpush1.bf16.msra.mxu0 %v588
    %685 = vmatprep.subr.bf16.mxu0 0
    %686 = vmatpush1.bf16.msra.mxu0 %v589
    %687 = vmatprep.subr.bf16.mxu0 0
    %688 = vmatpush1.bf16.msra.mxu0 %v590
    %689 = vmatprep.subr.bf16.mxu0 0
    %690 = vmatpush1.bf16.msra.mxu0 %v591
    %691 = vmatprep.subr.bf16.mxu0 0
    %692 = vmatpush1.bf16.msra.mxu0 %v592
    %693 = vmatprep.subr.bf16.mxu0 0
    %694 = vmatpush1.bf16.msra.mxu0 %v593
    %695 = vmatprep.subr.bf16.mxu0 0
    %696 = vmatpush1.bf16.msra.mxu0 %v594
    %697 = vmatprep.subr.bf16.mxu0 0
    %698 = vmatpush1.bf16.msra.mxu0 %v595
    %699 = vmatprep.subr.bf16.mxu0 0
    %700 = vmatpush1.bf16.msra.mxu0 %v596
    %701 = vmatprep.mubr.bf16.mxu0 %v365
    %702 = vmatmul.mubr.bf16.gmra.mrb[0].mxu0 %v364
    %v703 = vpop.f32.mrb[0].mxu0
    %v704 = vadd.f32 %v664, %v703
    %v705 = vpop.f32.mrb[0].mxu0
    %v706 = vpop.f32.mrb[0].mxu0
    %v707 = vpop.f32.mrb[0].mxu0
    %708 = vdwg.mxu0
    %709 = vst [vmem:[#allocation8] sm:$0xff] %v704
    // Predicated region
    $region34: #{tpu_custom_call.1} parent=1 // pred_check
      _
    $region35: #{tpu_custom_call.1} parent=1 // pred_check_branch
      %711 = sbr.rel (0) target = $region37
    $region36: #{tpu_custom_call.1} parent=1 // pred_region
      %s713 = ssub.s32 128, 128
      %714 = vsyncadd [#allocation4], %s713
      %s716 = sshll.u32 [#allocation8], 4
      %s717 = int_to_ptr.vmem [resolvable:$true] %s716
      %719 = dma.vmem_to_hbm [thread:$0]  %s717, 128, %s5, [#allocation4]
    $region37: #{tpu_custom_call.1} parent=1 // pred_fallthru
      _
    // Predicated region
    $region38: #{tpu_custom_call.1} parent=1 // pred_check
      _
    $region39: #{tpu_custom_call.1} parent=1 // pred_check_branch
      %721 = sbr.rel (0) target = $region41
    $region40: #{tpu_custom_call.1} parent=1 // pred_region
      %722 = dma.done [#allocation4], 128
    $region41: #{tpu_custom_call.1} parent=1 // pred_fallthru
      _
    %723 = vsyncpa [#allocation3], 1
    %724 = vsyncpa [#allocation6], 1
    %725 = vsyncpa [#allocation4], 1

</llo_original>
